<compile_context>
chip_gen: v7x
topology: tpu7x:2x2x1
jax: 0.10.0
libtpu: 0.0.40
codegen_flags: <defaults>
</compile_context>

<pallas_src>
import math

import jax
import jax.numpy as jnp
import numpy as np
from jax.experimental import pallas as pl
from jax.experimental.pallas import tpu as pltpu

MUL = 8                      # multiplicity of every irrep block (U)
NZ = 5                       # "5x0e" node attributes (V)
DIM_SH = 4                   # 1x0e + 1x1o
TP_WEIGHT_NUMEL = 2 * MUL    # two 'uvu' paths, (mul, 1) weights each
OUT_DIM = 4 * MUL            # 8x0e (8) + 8x1o (24)

_HI = jax.lax.Precision.HIGHEST  # reference only


def _conv_kernel(x_ref, z_ref, src_ref, dst_ref, emb_ref, attr_ref,
                 wa_ref, wtp_ref, wbig_ref, out_ref):
    x = x_ref[...]                        # (N, U) f32
    z = z_ref[...]                        # (N, V) f32
    n, u = x.shape
    v_dim = z.shape[1]
    e = emb_ref.shape[0]

    def kron(feat):
        # kron[n, v*C + c] = z[n, v] * feat[n, c]   (v-major, 2-D throughout)
        return jnp.concatenate(
            [feat * z[:, i:i + 1] for i in range(v_dim)], axis=-1)

    # --- si + lin1 fused: one (N, U*V) x (U*V, 2U) matmul ------------------
    kx = kron(x)                                              # (N, 40)
    sx = jnp.dot(kx, wa_ref[...], preferred_element_type=jnp.float32)
    s0 = sx[:, :u]                                            # si(x, z), 0e
    x1 = sx[:, u:]                                            # lin1(x, z)

    # --- per-edge tensor-product weights: (E, K) x (K, 2U) -----------------
    w_edge = jnp.dot(emb_ref[...], wtp_ref[...],
                     preferred_element_type=jnp.float32)      # (E, 16)
    w0 = w_edge[:, :u]            # 'uvu' weights of the 0e x 0e -> 0e path
    w1 = w_edge[:, u:]            # 'uvu' weights of the 0e x 1o -> 1o path

    # --- gather x1[edge_src] via one-hot matmul (E, N) x (N, U) ------------
    col_en = jax.lax.broadcasted_iota(jnp.int32, (e, n), 1)
    gather_oh = (col_en == src_ref[...]).astype(jnp.float32)  # (E, N)
    xg = jnp.dot(gather_oh, x1, preferred_element_type=jnp.float32)  # (E, U)

    # --- fused 0e + 3x1o edge messages: one (E, 4U) slab -------------------
    base1 = w1 * xg                                           # (E, U)
    msgs = jnp.concatenate(
        [w0 * xg * attr_ref[:, 0:1],                          # 0e messages
         base1 * attr_ref[:, 1:2],                            # 1o, m = 0
         base1 * attr_ref[:, 2:3],                            # 1o, m = 1
         base1 * attr_ref[:, 3:4]], axis=-1)                  # 1o, m = 2

    # --- scatter-add over edge_dst: transposed one-hot, ONE matmul ---------
    row_ne = jax.lax.broadcasted_iota(jnp.int32, (n, e), 0)   # node index
    scatter_oh = (row_ne == dst_ref[...]).astype(jnp.float32) # (N, E)
    agg = jnp.dot(scatter_oh, msgs,
                  preferred_element_type=jnp.float32)         # (N, 4U)

    # --- lin2 (0e + 1o) + /10 + e3nn interleave, fused into one matmul -----
    # wbig columns are already in the final [8x0e | 8x1o (w-major, m-minor)]
    # layout, with the 1/sqrt(U*V) normalization and the /10 folded in.
    out_tp = jnp.dot(kron(agg), wbig_ref[...],
                     preferred_element_type=jnp.float32)      # (N, 32)

    # s has no 1o path -> pad its 0e block and add; single lane-dense store.
    s_full = jnp.concatenate([s0, jnp.zeros((n, 3 * u), jnp.float32)], axis=-1)
    out_ref[...] = out_tp + s_full


def _full_spec(shape):
    nd = len(shape)
    return pl.BlockSpec(shape, lambda i, _nd=nd: (0,) * _nd)


def pack_params(params):
    """One-time parameter packing (hoisted out of the per-call path).

    Produces:
      w_a   (U*V, 2U) : [si | lin1] FCTP weights in v-major kron layout, * norm
      w_tp  (K, 2U)   : per-edge 'uvu' weight generator (unchanged)
      w_big (4U*V, 4U): lin2 0e+1o weights in v-major kron layout over the
                        fused (E,32) message slab, with norm and /10 folded in,
                        columns in the final e3nn [8x0e | 8x1o] output layout.
    """
    u, v = MUL, NZ
    norm = 1.0 / math.sqrt(u * v)

    w_si_r = (jnp.transpose(params["w_si"], (1, 0, 2)) * norm).reshape(v * u, u)
    w_l1_r = (jnp.transpose(params["w_l1"], (1, 0, 2)) * norm).reshape(v * u, u)
    w_a = jnp.concatenate([w_si_r, w_l1_r], axis=1)           # (40, 16)

    w0e = jnp.transpose(params["w_l2_0e"], (1, 0, 2)) * (norm / 10.0)  # (V,U,W)
    w1o = jnp.transpose(params["w_l2_1o"], (1, 0, 2)) * (norm / 10.0)  # (V,U,W)
    big = jnp.zeros((v, 4 * u, 4 * u), jnp.float32)
    # agg channel c = u_idx            -> output column w            (0e block)
    big = big.at[:, 0:u, 0:u].set(w0e)
    # agg channel c = u + m*u + u_idx  -> output column u + w*3 + m  (1o block)
    for m in range(3):
        big = big.at[:, u * (m + 1):u * (m + 2), u + m::3].set(w1o)
    w_big = big.reshape(v * 4 * u, 4 * u)                     # (160, 32)

    return {"w_a": w_a,
            "w_tp": params["tp_weight"].astype(jnp.float32),
            "w_big": w_big}


def conv_forward(x, z, edge_src, edge_dst, edge_len_emb, edge_attr, packed):
    n, u = x.shape
    e = edge_src.shape[0]
    src2 = edge_src.reshape(e, 1).astype(jnp.int32)   # (E, 1) for gather mask
    dst2 = edge_dst.reshape(1, e).astype(jnp.int32)   # (1, E) for scatter mask

    inputs = (x, z, src2, dst2, edge_len_emb, edge_attr,
              packed["w_a"], packed["w_tp"], packed["w_big"])

    return pl.pallas_call(
        _conv_kernel,
        grid=(1,),
        in_specs=[_full_spec(a.shape) for a in inputs],
        out_specs=_full_spec((n, 4 * u)),
        out_shape=jax.ShapeDtypeStruct((n, 4 * u), jnp.float32),
        compiler_params=pltpu.CompilerParams(
            dimension_semantics=("arbitrary",)),
    )(*inputs)


def conv_reference(x, z, edge_src, edge_dst, edge_len_emb, edge_attr, params):
    """Pure-JAX reference of the same math (exact, for the correctness check)."""
    n, u = x.shape
    v = z.shape[1]
    norm = 1.0 / np.sqrt(u * v)

    def fctp(feat, w):
        return jnp.einsum("uvw,nu,nv->nw", w, feat, z, precision=_HI) * norm

    s0 = fctp(x, params["w_si"])
    x1 = fctp(x, params["w_l1"])
    w_edge = jnp.dot(edge_len_emb, params["tp_weight"], precision=_HI)
    xg = x1[edge_src]
    e0 = w_edge[:, :u] * xg * edge_attr[:, 0:1]
    e1 = (w_edge[:, u:] * xg)[:, :, None] * edge_attr[:, None, 1:4]
    m0 = jnp.zeros((n, u), jnp.float32).at[edge_dst].add(e0)
    m1 = jnp.zeros((n, u, 3), jnp.float32).at[edge_dst].add(e1)
    o0 = s0 + fctp(m0, params["w_l2_0e"]) / 10.0
    o1 = jnp.einsum("uvw,num,nv->nwm", params["w_l2_1o"], m1, z,
                    precision=_HI) * norm / 10.0
    return jnp.concatenate([o0, o1.reshape(n, 3 * u)], axis=-1)


if __name__ == "__main__":
    N, E, K = 16, 32, 16
    key = jax.random.PRNGKey(0)
    ks = jax.random.split(key, 11)

    x = jax.random.normal(ks[0], (N, MUL), jnp.float32)
    z = jax.random.normal(ks[1], (N, NZ), jnp.float32)
    edge_src = jax.random.randint(ks[2], (E,), 0, N, jnp.int32)
    edge_dst = jax.random.randint(ks[3], (E,), 0, N, jnp.int32)
    edge_len_emb = jax.random.normal(ks[4], (E, K), jnp.float32)
    edge_attr = jax.random.normal(ks[5], (E, DIM_SH), jnp.float32)

    params = {
        "w_si": jax.random.normal(ks[6], (MUL, NZ, MUL), jnp.float32),
        "w_l1": jax.random.normal(ks[7], (MUL, NZ, MUL), jnp.float32),
        "tp_weight": jax.random.normal(ks[8], (K, TP_WEIGHT_NUMEL), jnp.float32),
        "w_l2_0e": jax.random.normal(ks[9], (MUL, NZ, MUL), jnp.float32),
        "w_l2_1o": jax.random.normal(ks[10], (MUL, NZ, MUL), jnp.float32),
    }

    packed = jax.tree.map(jax.block_until_ready, pack_params(params))

    out = jax.jit(conv_forward)(x, z, edge_src, edge_dst,
                                edge_len_emb, edge_attr, packed)
    jax.block_until_ready(out)

    ref = conv_reference(x, z, edge_src, edge_dst, edge_len_emb, edge_attr,
                         params)
    # Kernel uses default MXU precision (bf16 passes) per the perf review;
    # tolerance sized accordingly.
    np.testing.assert_allclose(np.asarray(out), np.asarray(ref),
                               rtol=2e-2, atol=2e-2)
    print("KERNEL_OK")
</pallas_src>

<mosaic_0001>
module attributes {stable_mosaic.version = 11 : i64} {
  func.func @_conv_kernel(%arg0: i32, %arg1: memref<16x8xf32, #tpu.memory_space<vmem>>, %arg2: memref<16x5xf32, #tpu.memory_space<vmem>>, %arg3: memref<32x1xi32, #tpu.memory_space<vmem>>, %arg4: memref<1x32xi32, #tpu.memory_space<vmem>>, %arg5: memref<32x16xf32, #tpu.memory_space<vmem>>, %arg6: memref<32x4xf32, #tpu.memory_space<vmem>>, %arg7: memref<40x16xf32, #tpu.memory_space<vmem>>, %arg8: memref<16x16xf32, #tpu.memory_space<vmem>>, %arg9: memref<160x32xf32, #tpu.memory_space<vmem>>, %arg10: memref<16x32xf32, #tpu.memory_space<vmem>>) attributes {dimension_semantics = [#tpu.dimension_semantics<arbitrary>], iteration_bounds = array<i64: 1>, scalar_prefetch = 0 : i64, scratch_operands = 0 : i64, tpu.core_type = #tpu.core_type<tc>, window_params = [{pipeline_mode = #tpu.pipeline_mode<synchronous>, transform_indices = @transform_0, window_bounds = array<i64: 16, 8>}, {pipeline_mode = #tpu.pipeline_mode<synchronous>, transform_indices = @transform_1, window_bounds = array<i64: 16, 5>}, {pipeline_mode = #tpu.pipeline_mode<synchronous>, transform_indices = @transform_2, window_bounds = array<i64: 32, 1>}, {pipeline_mode = #tpu.pipeline_mode<synchronous>, transform_indices = @transform_3, window_bounds = array<i64: 1, 32>}, {pipeline_mode = #tpu.pipeline_mode<synchronous>, transform_indices = @transform_4, window_bounds = array<i64: 32, 16>}, {pipeline_mode = #tpu.pipeline_mode<synchronous>, transform_indices = @transform_5, window_bounds = array<i64: 32, 4>}, {pipeline_mode = #tpu.pipeline_mode<synchronous>, transform_indices = @transform_6, window_bounds = array<i64: 40, 16>}, {pipeline_mode = #tpu.pipeline_mode<synchronous>, transform_indices = @transform_7, window_bounds = array<i64: 16, 16>}, {pipeline_mode = #tpu.pipeline_mode<synchronous>, transform_indices = @transform_8, window_bounds = array<i64: 160, 32>}, {pipeline_mode = #tpu.pipeline_mode<synchronous>, transform_indices = @transform_9, window_bounds = array<i64: 16, 32>}]} {
    %c0 = arith.constant 0 : index
    %c0_0 = arith.constant 0 : index
    %0 = vector.load %arg1[%c0, %c0_0] : memref<16x8xf32, #tpu.memory_space<vmem>>, vector<16x8xf32>
    %c0_1 = arith.constant 0 : index
    %c0_2 = arith.constant 0 : index
    %1 = vector.load %arg2[%c0_1, %c0_2] : memref<16x5xf32, #tpu.memory_space<vmem>>, vector<16x5xf32>
    %2 = vector.extract_strided_slice %1 {offsets = [0, 0], sizes = [16, 1], strides = [1, 1]} : vector<16x5xf32> to vector<16x1xf32>
    %3 = vector.broadcast %2 : vector<16x1xf32> to vector<16x8xf32>
    %4 = arith.mulf %0, %3 : vector<16x8xf32>
    %5 = vector.extract_strided_slice %1 {offsets = [0, 1], sizes = [16, 1], strides = [1, 1]} : vector<16x5xf32> to vector<16x1xf32>
    %6 = vector.broadcast %5 : vector<16x1xf32> to vector<16x8xf32>
    %7 = arith.mulf %0, %6 : vector<16x8xf32>
    %8 = vector.extract_strided_slice %1 {offsets = [0, 2], sizes = [16, 1], strides = [1, 1]} : vector<16x5xf32> to vector<16x1xf32>
    %9 = vector.broadcast %8 : vector<16x1xf32> to vector<16x8xf32>
    %10 = arith.mulf %0, %9 : vector<16x8xf32>
    %11 = vector.extract_strided_slice %1 {offsets = [0, 3], sizes = [16, 1], strides = [1, 1]} : vector<16x5xf32> to vector<16x1xf32>
    %12 = vector.broadcast %11 : vector<16x1xf32> to vector<16x8xf32>
    %13 = arith.mulf %0, %12 : vector<16x8xf32>
    %14 = vector.extract_strided_slice %1 {offsets = [0, 4], sizes = [16, 1], strides = [1, 1]} : vector<16x5xf32> to vector<16x1xf32>
    %15 = vector.broadcast %14 : vector<16x1xf32> to vector<16x8xf32>
    %16 = arith.mulf %0, %15 : vector<16x8xf32>
    %17 = tpu.concatenate %4, %7, %10, %13, %16 in 1 : vector<16x8xf32>, vector<16x8xf32>, vector<16x8xf32>, vector<16x8xf32>, vector<16x8xf32> -> vector<16x40xf32>
    %c0_3 = arith.constant 0 : index
    %c0_4 = arith.constant 0 : index
    %18 = vector.load %arg7[%c0_3, %c0_4] : memref<40x16xf32, #tpu.memory_space<vmem>>, vector<40x16xf32>
    %cst = arith.constant dense<0.000000e+00> : vector<16x16xf32>
    %19 = tpu.matmul %17, %18, %cst {dimension_numbers = #tpu.dot_dimension_numbers<[1], [0], [0], [1], [0, 0, 1, 1], [], []>} : vector<16x40xf32>, vector<40x16xf32>, vector<16x16xf32> -> vector<16x16xf32>
    %20 = vector.extract_strided_slice %19 {offsets = [0, 0], sizes = [16, 8], strides = [1, 1]} : vector<16x16xf32> to vector<16x8xf32>
    %21 = vector.extract_strided_slice %19 {offsets = [0, 8], sizes = [16, 8], strides = [1, 1]} : vector<16x16xf32> to vector<16x8xf32>
    %c0_5 = arith.constant 0 : index
    %c0_6 = arith.constant 0 : index
    %22 = vector.load %arg5[%c0_5, %c0_6] : memref<32x16xf32, #tpu.memory_space<vmem>>, vector<32x16xf32>
    %c0_7 = arith.constant 0 : index
    %c0_8 = arith.constant 0 : index
    %23 = vector.load %arg8[%c0_7, %c0_8] : memref<16x16xf32, #tpu.memory_space<vmem>>, vector<16x16xf32>
    %cst_9 = arith.constant dense<0.000000e+00> : vector<32x16xf32>
    %24 = tpu.matmul %22, %23, %cst_9 {dimension_numbers = #tpu.dot_dimension_numbers<[1], [0], [0], [1], [0, 0, 1, 1], [], []>} : vector<32x16xf32>, vector<16x16xf32>, vector<32x16xf32> -> vector<32x16xf32>
    %25 = vector.extract_strided_slice %24 {offsets = [0, 0], sizes = [32, 8], strides = [1, 1]} : vector<32x16xf32> to vector<32x8xf32>
    %26 = vector.extract_strided_slice %24 {offsets = [0, 8], sizes = [32, 8], strides = [1, 1]} : vector<32x16xf32> to vector<32x8xf32>
    %27 = tpu.iota {dimensions = array<i32: 1>} : vector<32x16xi32>
    %c0_10 = arith.constant 0 : index
    %c0_11 = arith.constant 0 : index
    %28 = vector.load %arg3[%c0_10, %c0_11] : memref<32x1xi32, #tpu.memory_space<vmem>>, vector<32x1xi32>
    %29 = vector.broadcast %28 : vector<32x1xi32> to vector<32x16xi32>
    %30 = arith.cmpi eq, %27, %29 : vector<32x16xi32>
    %31 = arith.extui %30 : vector<32x16xi1> to vector<32x16xi32>
    %32 = arith.sitofp %31 : vector<32x16xi32> to vector<32x16xf32>
    %cst_12 = arith.constant dense<0.000000e+00> : vector<32x8xf32>
    %33 = tpu.matmul %32, %21, %cst_12 {dimension_numbers = #tpu.dot_dimension_numbers<[1], [0], [0], [1], [0, 0, 1, 1], [], []>} : vector<32x16xf32>, vector<16x8xf32>, vector<32x8xf32> -> vector<32x8xf32>
    %34 = arith.mulf %26, %33 : vector<32x8xf32>
    %35 = arith.mulf %25, %33 : vector<32x8xf32>
    %c0_13 = arith.constant 0 : index
    %c0_14 = arith.constant 0 : index
    %36 = vector.load %arg6[%c0_13, %c0_14] : memref<32x4xf32, #tpu.memory_space<vmem>>, vector<32x1xf32>
    %37 = vector.broadcast %36 : vector<32x1xf32> to vector<32x8xf32>
    %38 = arith.mulf %35, %37 : vector<32x8xf32>
    %c0_15 = arith.constant 0 : index
    %c1 = arith.constant 1 : index
    %39 = vector.load %arg6[%c0_15, %c1] : memref<32x4xf32, #tpu.memory_space<vmem>>, vector<32x1xf32>
    %40 = vector.broadcast %39 : vector<32x1xf32> to vector<32x8xf32>
    %41 = arith.mulf %34, %40 : vector<32x8xf32>
    %c0_16 = arith.constant 0 : index
    %c2 = arith.constant 2 : index
    %42 = vector.load %arg6[%c0_16, %c2] : memref<32x4xf32, #tpu.memory_space<vmem>>, vector<32x1xf32>
    %43 = vector.broadcast %42 : vector<32x1xf32> to vector<32x8xf32>
    %44 = arith.mulf %34, %43 : vector<32x8xf32>
    %c0_17 = arith.constant 0 : index
    %c3 = arith.constant 3 : index
    %45 = vector.load %arg6[%c0_17, %c3] : memref<32x4xf32, #tpu.memory_space<vmem>>, vector<32x1xf32>
    %46 = vector.broadcast %45 : vector<32x1xf32> to vector<32x8xf32>
    %47 = arith.mulf %34, %46 : vector<32x8xf32>
    %48 = tpu.concatenate %38, %41, %44, %47 in 1 : vector<32x8xf32>, vector<32x8xf32>, vector<32x8xf32>, vector<32x8xf32> -> vector<32x32xf32>
    %49 = tpu.iota {dimensions = array<i32: 0>} : vector<16x32xi32>
    %c0_18 = arith.constant 0 : index
    %c0_19 = arith.constant 0 : index
    %50 = vector.load %arg4[%c0_18, %c0_19] : memref<1x32xi32, #tpu.memory_space<vmem>>, vector<1x32xi32>
    %51 = vector.broadcast %50 : vector<1x32xi32> to vector<16x32xi32>
    %52 = arith.cmpi eq, %49, %51 : vector<16x32xi32>
    %53 = arith.extui %52 : vector<16x32xi1> to vector<16x32xi32>
    %54 = arith.sitofp %53 : vector<16x32xi32> to vector<16x32xf32>
    %cst_20 = arith.constant dense<0.000000e+00> : vector<16x32xf32>
    %55 = tpu.matmul %54, %48, %cst_20 {dimension_numbers = #tpu.dot_dimension_numbers<[1], [0], [0], [1], [0, 0, 1, 1], [], []>} : vector<16x32xf32>, vector<32x32xf32>, vector<16x32xf32> -> vector<16x32xf32>
    %56 = vector.extract_strided_slice %1 {offsets = [0, 0], sizes = [16, 1], strides = [1, 1]} : vector<16x5xf32> to vector<16x1xf32>
    %57 = vector.broadcast %56 : vector<16x1xf32> to vector<16x32xf32>
    %58 = arith.mulf %55, %57 : vector<16x32xf32>
    %59 = vector.extract_strided_slice %1 {offsets = [0, 1], sizes = [16, 1], strides = [1, 1]} : vector<16x5xf32> to vector<16x1xf32>
    %60 = vector.broadcast %59 : vector<16x1xf32> to vector<16x32xf32>
    %61 = arith.mulf %55, %60 : vector<16x32xf32>
    %62 = vector.extract_strided_slice %1 {offsets = [0, 2], sizes = [16, 1], strides = [1, 1]} : vector<16x5xf32> to vector<16x1xf32>
    %63 = vector.broadcast %62 : vector<16x1xf32> to vector<16x32xf32>
    %64 = arith.mulf %55, %63 : vector<16x32xf32>
    %65 = vector.extract_strided_slice %1 {offsets = [0, 3], sizes = [16, 1], strides = [1, 1]} : vector<16x5xf32> to vector<16x1xf32>
    %66 = vector.broadcast %65 : vector<16x1xf32> to vector<16x32xf32>
    %67 = arith.mulf %55, %66 : vector<16x32xf32>
    %68 = vector.extract_strided_slice %1 {offsets = [0, 4], sizes = [16, 1], strides = [1, 1]} : vector<16x5xf32> to vector<16x1xf32>
    %69 = vector.broadcast %68 : vector<16x1xf32> to vector<16x32xf32>
    %70 = arith.mulf %55, %69 : vector<16x32xf32>
    %71 = tpu.concatenate %58, %61, %64, %67, %70 in 1 : vector<16x32xf32>, vector<16x32xf32>, vector<16x32xf32>, vector<16x32xf32>, vector<16x32xf32> -> vector<16x160xf32>
    %c0_21 = arith.constant 0 : index
    %c0_22 = arith.constant 0 : index
    %72 = vector.load %arg9[%c0_21, %c0_22] : memref<160x32xf32, #tpu.memory_space<vmem>>, vector<160x32xf32>
    %cst_23 = arith.constant dense<0.000000e+00> : vector<16x32xf32>
    %73 = tpu.matmul %71, %72, %cst_23 {dimension_numbers = #tpu.dot_dimension_numbers<[1], [0], [0], [1], [0, 0, 1, 1], [], []>} : vector<16x160xf32>, vector<160x32xf32>, vector<16x32xf32> -> vector<16x32xf32>
    %cst_24 = arith.constant 0.000000e+00 : f32
    %74 = vector.broadcast %cst_24 : f32 to vector<16x24xf32>
    %75 = tpu.concatenate %20, %74 in 1 : vector<16x8xf32>, vector<16x24xf32> -> vector<16x32xf32>
    %76 = arith.addf %73, %75 : vector<16x32xf32>
    %c0_25 = arith.constant 0 : index
    %c0_26 = arith.constant 0 : index
    %77 = vector.load %arg10[%c0_25, %c0_26] : memref<16x32xf32, #tpu.memory_space<vmem>>, vector<16x32xf32>
    tpu.vector_store %arg10[%c0_25, %c0_26], %76 {strides = array<i32>} : memref<16x32xf32, #tpu.memory_space<vmem>>, vector<16x32xf32>,
    return
  }
  func.func @transform_0(%arg0: i32) -> (i32, i32) {
    %c0_i32 = arith.constant 0 : i32
    %c0_i32_0 = arith.constant 0 : i32
    %c0_i32_1 = arith.constant 0 : i32
    return %c0_i32, %c0_i32_0 : i32, i32
  }
  func.func @transform_1(%arg0: i32) -> (i32, i32) {
    %c0_i32 = arith.constant 0 : i32
    %c0_i32_0 = arith.constant 0 : i32
    %c0_i32_1 = arith.constant 0 : i32
    return %c0_i32, %c0_i32_0 : i32, i32
  }
  func.func @transform_2(%arg0: i32) -> (i32, i32) {
    %c0_i32 = arith.constant 0 : i32
    %c0_i32_0 = arith.constant 0 : i32
    %c0_i32_1 = arith.constant 0 : i32
    return %c0_i32, %c0_i32_0 : i32, i32
  }
  func.func @transform_3(%arg0: i32) -> (i32, i32) {
    %c0_i32 = arith.constant 0 : i32
    %c0_i32_0 = arith.constant 0 : i32
    %c0_i32_1 = arith.constant 0 : i32
    return %c0_i32, %c0_i32_0 : i32, i32
  }
  func.func @transform_4(%arg0: i32) -> (i32, i32) {
    %c0_i32 = arith.constant 0 : i32
    %c0_i32_0 = arith.constant 0 : i32
    %c0_i32_1 = arith.constant 0 : i32
    return %c0_i32, %c0_i32_0 : i32, i32
  }
  func.func @transform_5(%arg0: i32) -> (i32, i32) {
    %c0_i32 = arith.constant 0 : i32
    %c0_i32_0 = arith.constant 0 : i32
    %c0_i32_1 = arith.constant 0 : i32
    return %c0_i32, %c0_i32_0 : i32, i32
  }
  func.func @transform_6(%arg0: i32) -> (i32, i32) {
    %c0_i32 = arith.constant 0 : i32
    %c0_i32_0 = arith.constant 0 : i32
    %c0_i32_1 = arith.constant 0 : i32
    return %c0_i32, %c0_i32_0 : i32, i32
  }
  func.func @transform_7(%arg0: i32) -> (i32, i32) {
    %c0_i32 = arith.constant 0 : i32
    %c0_i32_0 = arith.constant 0 : i32
    %c0_i32_1 = arith.constant 0 : i32
    return %c0_i32, %c0_i32_0 : i32, i32
  }
  func.func @transform_8(%arg0: i32) -> (i32, i32) {
    %c0_i32 = arith.constant 0 : i32
    %c0_i32_0 = arith.constant 0 : i32
    %c0_i32_1 = arith.constant 0 : i32
    return %c0_i32, %c0_i32_0 : i32, i32
  }
  func.func @transform_9(%arg0: i32) -> (i32, i32) {
    %c0_i32 = arith.constant 0 : i32
    %c0_i32_0 = arith.constant 0 : i32
    %c0_i32_1 = arith.constant 0 : i32
    return %c0_i32, %c0_i32_0 : i32, i32
  }
}

</mosaic_0001>

<llo_original>
// kernel: conv_forward.1
$region0: #{conv_forward.1}
  #allocation0 [shape = 'u32[]', space=smem, size = 0x4, offset = 0x4, fixed_abs, tag = 'smem constant byte address 0x4 - core index']
  #allocation1 [shape = 'u32[144,128]{1,0:T(1,128)}', space=vmem, size = 0x12000, scoped, tag = 'internal scratch']
  %s0 = inlined_call_operand.vmem [shape: f32[16,8], index: 0, kind: input, shape index: {}]
  %s1 = inlined_call_operand.vmem [shape: f32[16,5], index: 1, kind: input, shape index: {}]
  %s2 = inlined_call_operand.vmem [shape: s32[32,1], index: 2, kind: input, shape index: {}]
  %s3 = inlined_call_operand.vmem [shape: s32[1,32], index: 3, kind: input, shape index: {}]
  %s4 = inlined_call_operand.vmem [shape: f32[32,16], index: 4, kind: input, shape index: {}]
  %s5 = inlined_call_operand.vmem [shape: f32[32,4], index: 5, kind: input, shape index: {}]
  %s6 = inlined_call_operand.vmem [shape: f32[40,16], index: 6, kind: input, shape index: {}]
  %s7 = inlined_call_operand.vmem [shape: f32[16,16], index: 7, kind: input, shape index: {}]
  %s8 = inlined_call_operand.vmem [shape: f32[160,32], index: 8, kind: input, shape index: {}]
  %s9 = inlined_call_operand.hbm [shape: f32[16,32], index: 9, kind: output, shape index: {}]
  %s10 = sld [smem:[#allocation0]]
  $region46: #{conv_forward.1} parent=0
    _
  %s12 = ssub.s32 1, %s10
  %s13 = scalar_select 0, %s12, %s10
  $region1: #{conv_forward.1} parent=0
    #allocation2 [shape = 'u8[8192]{0}', space=vmem, size = 0x2000, scoped, tag = 'output window, operand 0, single buffered']
    #allocation3 [shape = 's32[1]{0}', space=sflag, size = 0x4, scoped, tag = 'scoped memory for conv_forward.1']
    %14 = vsyncpa [#allocation3], 0
    // Predicated region
    $region2: #{conv_forward.1} parent=1 // pred_check
      _
    $region3: #{conv_forward.1} parent=1 // pred_check_branch
      %16 = sbr.rel (0) target = $region5
    $region4: #{conv_forward.1} parent=1 // pred_region
      _
    $region5: #{conv_forward.1} parent=1 // pred_fallthru
      _
    // Predicated region
    $region6: #{conv_forward.1} parent=1 // pred_check
      _
    $region7: #{conv_forward.1} parent=1 // pred_check_branch
      %18 = sbr.rel (0) target = $region9
    $region8: #{conv_forward.1} parent=1 // pred_region
      _
    $region9: #{conv_forward.1} parent=1 // pred_fallthru
      _
    // Predicated region
    $region10: #{conv_forward.1} parent=1 // pred_check
      _
    $region11: #{conv_forward.1} parent=1 // pred_check_branch
      %20 = sbr.rel (0) target = $region13
    $region12: #{conv_forward.1} parent=1 // pred_region
      _
    $region13: #{conv_forward.1} parent=1 // pred_fallthru
      _
    // Predicated region
    $region14: #{conv_forward.1} parent=1 // pred_check
      _
    $region15: #{conv_forward.1} parent=1 // pred_check_branch
      %22 = sbr.rel (0) target = $region17
    $region16: #{conv_forward.1} parent=1 // pred_region
      _
    $region17: #{conv_forward.1} parent=1 // pred_fallthru
      _
    // Predicated region
    $region18: #{conv_forward.1} parent=1 // pred_check
      _
    $region19: #{conv_forward.1} parent=1 // pred_check_branch
      %24 = sbr.rel (0) target = $region21
    $region20: #{conv_forward.1} parent=1 // pred_region
      _
    $region21: #{conv_forward.1} parent=1 // pred_fallthru
      _
    // Predicated region
    $region22: #{conv_forward.1} parent=1 // pred_check
      _
    $region23: #{conv_forward.1} parent=1 // pred_check_branch
      %26 = sbr.rel (0) target = $region25
    $region24: #{conv_forward.1} parent=1 // pred_region
      _
    $region25: #{conv_forward.1} parent=1 // pred_fallthru
      _
    // Predicated region
    $region26: #{conv_forward.1} parent=1 // pred_check
      _
    $region27: #{conv_forward.1} parent=1 // pred_check_branch
      %28 = sbr.rel (0) target = $region29
    $region28: #{conv_forward.1} parent=1 // pred_region
      _
    $region29: #{conv_forward.1} parent=1 // pred_fallthru
      _
    // Predicated region
    $region30: #{conv_forward.1} parent=1 // pred_check
      _
    $region31: #{conv_forward.1} parent=1 // pred_check_branch
      %30 = sbr.rel (0) target = $region33
    $region32: #{conv_forward.1} parent=1 // pred_region
      _
    $region33: #{conv_forward.1} parent=1 // pred_fallthru
      _
    // Predicated region
    $region34: #{conv_forward.1} parent=1 // pred_check
      _
    $region35: #{conv_forward.1} parent=1 // pred_check_branch
      %32 = sbr.rel (0) target = $region37
    $region36: #{conv_forward.1} parent=1 // pred_region
      _
    $region37: #{conv_forward.1} parent=1 // pred_fallthru
      _
    %v33 = vld [vmem:[%s0] sm:$0xff]
    %v34 = vld [vmem:[%s0 + $0x8] sm:$0xff]
    %v35 = vld [vmem:[%s1] sm:$0xff]
    %v36 = vld [vmem:[%s1 + $0x8] sm:$0xff]
    %38 = vset.pattern.permute.xlu0 0
    %39 = vperm.xlu0 %38, %v35
    %v40 = vpop.permute.xlu0 %39
    %43 = vset.pattern.permute.xlu0 0
    %44 = vperm.xlu0 %43, %v36
    %v45 = vpop.permute.xlu0 %44
    %v47 = vmul.f32 %v33, %v40
    %v48 = vmul.f32 %v34, %v45
    %49 = vset.pattern.permute.xlu0 1
    %50 = vperm.xlu0 %49, %v35
    %v51 = vpop.permute.xlu0 %50
    %53 = vset.pattern.permute.xlu0 1
    %54 = vperm.xlu0 %53, %v36
    %v55 = vpop.permute.xlu0 %54
    %v57 = vmul.f32 %v33, %v51
    %v58 = vmul.f32 %v34, %v55
    %59 = vset.pattern.permute.xlu0 2
    %60 = vperm.xlu0 %59, %v35
    %v61 = vpop.permute.xlu0 %60
    %63 = vset.pattern.permute.xlu0 2
    %64 = vperm.xlu0 %63, %v36
    %v65 = vpop.permute.xlu0 %64
    %v67 = vmul.f32 %v33, %v61
    %v68 = vmul.f32 %v34, %v65
    %69 = vset.pattern.permute.xlu0 3
    %70 = vperm.xlu0 %69, %v35
    %v71 = vpop.permute.xlu0 %70
    %73 = vset.pattern.permute.xlu0 3
    %74 = vperm.xlu0 %73, %v36
    %v75 = vpop.permute.xlu0 %74
    %v77 = vmul.f32 %v33, %v71
    %v78 = vmul.f32 %v34, %v75
    %79 = vset.pattern.permute.xlu0 4
    %80 = vperm.xlu0 %79, %v35
    %v81 = vpop.permute.xlu0 %80
    %83 = vset.pattern.permute.xlu0 4
    %84 = vperm.xlu0 %83, %v36
    %v85 = vpop.permute.xlu0 %84
    %v87 = vmul.f32 %v33, %v81
    %v88 = vmul.f32 %v34, %v85
    %91 = vrot.lane.b32.xlu0 %v57, 8
    %v92 = vpop.permute.xlu0 %91
    %93 = vrot.lane.b32.xlu0 %v58, 8
    %v94 = vpop.permute.xlu0 %93
    %99 = vrot.lane.b32.xlu0 %v67, 16
    %v100 = vpop.permute.xlu0 %99
    %101 = vrot.lane.b32.xlu0 %v68, 16
    %v102 = vpop.permute.xlu0 %101
    %107 = vrot.lane.b32.xlu0 %v77, 24
    %v108 = vpop.permute.xlu0 %107
    %109 = vrot.lane.b32.xlu0 %v78, 24
    %v110 = vpop.permute.xlu0 %109
    %115 = vrot.lane.b32.xlu0 %v87, 32
    %v116 = vpop.permute.xlu0 %115
    %117 = vrot.lane.b32.xlu0 %v88, 32
    %v118 = vpop.permute.xlu0 %117
    %vm121 = vcmask 64512
    %v122 = vsel %vm121, %v47, %v92
    %v123 = vsel %vm121, %v48, %v94
    %vm124 = vcmask 130048
    %v125 = vsel %vm124, %v122, %v100
    %v126 = vsel %vm124, %v123, %v102
    %vm127 = vcmask 195584
    %v128 = vsel %vm127, %v125, %v108
    %v129 = vsel %vm127, %v126, %v110
    %vm130 = vcmask 261120
    %v131 = vsel %vm130, %v128, %v116
    %v132 = vsel %vm130, %v129, %v118
    %v133 = vld [vmem:[%s6] sm:$0xff]
    %v134 = vld [vmem:[%s6 + $0x8] sm:$0xff]
    %v135 = vld [vmem:[%s6 + $0x10] sm:$0xff]
    %v136 = vld [vmem:[%s6 + $0x18] sm:$0xff]
    %v137 = vld [vmem:[%s6 + $0x20] sm:$0xff]
    %vm138 = vcmask 326656
    %v140 = vsel %vm138, %v131, 0
    %v143 = vsel %vm138, %v132, 0
    %145 = vmatprep.subr.mxu0 0.0
    %146 = vmatpush1.msra.mxu0 %v133
    %147 = vmatprep.subr.mxu0 0.0
    %148 = vmatpush1.msra.mxu0 %v134
    %149 = vmatprep.subr.mxu0 0.0
    %150 = vmatpush1.msra.mxu0 %v135
    %151 = vmatprep.subr.mxu0 0.0
    %152 = vmatpush1.msra.mxu0 %v136
    %153 = vmatprep.subr.mxu0 0.0
    %154 = vmatpush1.msra.mxu0 %v137
    %155 = vmatprep.subr.mxu0 0.0
    %156 = vmatpush1.msra.mxu0 0.0
    %157 = vmatprep.subr.mxu0 0.0
    %158 = vmatpush1.msra.mxu0 0.0
    %159 = vmatprep.subr.mxu0 0.0
    %160 = vmatpush1.msra.mxu0 0.0
    %161 = vmatprep.subr.mxu0 0.0
    %162 = vmatpush1.msra.mxu0 0.0
    %163 = vmatprep.subr.mxu0 0.0
    %164 = vmatpush1.msra.mxu0 0.0
    %165 = vmatprep.subr.mxu0 0.0
    %166 = vmatpush1.msra.mxu0 0.0
    %167 = vmatprep.subr.mxu0 0.0
    %168 = vmatpush1.msra.mxu0 0.0
    %169 = vmatprep.subr.mxu0 0.0
    %170 = vmatpush1.msra.mxu0 0.0
    %171 = vmatprep.subr.mxu0 0.0
    %172 = vmatpush1.msra.mxu0 0.0
    %173 = vmatprep.subr.mxu0 0.0
    %174 = vmatpush1.msra.mxu0 0.0
    %175 = vmatprep.subr.mxu0 0.0
    %176 = vmatpush1.msra.mxu0 0.0
    %177 = vmatprep.subr.mxu0 0.0
    %178 = vmatpush1.msra.mxu0 0.0
    %179 = vmatprep.subr.mxu0 0.0
    %180 = vmatpush1.msra.mxu0 0.0
    %181 = vmatprep.subr.mxu0 0.0
    %182 = vmatpush1.msra.mxu0 0.0
    %183 = vmatprep.subr.mxu0 0.0
    %184 = vmatpush1.msra.mxu0 0.0
    %185 = vmatprep.subr.mxu0 0.0
    %186 = vmatpush1.msra.mxu0 0.0
    %187 = vmatprep.subr.mxu0 0.0
    %188 = vmatpush1.msra.mxu0 0.0
    %189 = vmatprep.subr.mxu0 0.0
    %190 = vmatpush1.msra.mxu0 0.0
    %191 = vmatprep.subr.mxu0 0.0
    %192 = vmatpush1.msra.mxu0 0.0
    %193 = vmatprep.subr.mxu0 0.0
    %194 = vmatpush1.msra.mxu0 0.0
    %195 = vmatprep.subr.mxu0 0.0
    %196 = vmatpush1.msra.mxu0 0.0
    %197 = vmatprep.subr.mxu0 0.0
    %198 = vmatpush1.msra.mxu0 0.0
    %199 = vmatprep.subr.mxu0 0.0
    %200 = vmatpush1.msra.mxu0 0.0
    %201 = vmatprep.subr.mxu0 0.0
    %202 = vmatpush1.msra.mxu0 0.0
    %203 = vmatprep.subr.mxu0 0.0
    %204 = vmatpush1.msra.mxu0 0.0
    %205 = vmatprep.subr.mxu0 0.0
    %206 = vmatpush1.msra.mxu0 0.0
    %207 = vmatprep.subr.mxu0 0.0
    %208 = vmatpush1.msra.mxu0 0.0
    %209 = vmatprep.mubr.f32.mxu0 0.0
    %210 = vmatmul.mubr.f32.gmra.mrb[0].mxu0 %v140
    %v211 = vpop.f32.mrb[0].mxu0
    %v212 = vadd.f32 0.0, %v211
    %v213 = vpop.f32.mrb[0].mxu0
    %214 = vmatprep.mubr.f32.mxu0 0.0
    %215 = vmatmul.mubr.f32.gmra.mrb[0].mxu0 %v143
    %v216 = vpop.f32.mrb[0].mxu0
    %v217 = vadd.f32 0.0, %v216
    %v218 = vpop.f32.mrb[0].mxu0
    %219 = vdwg.mxu0
    %v220 = vld [vmem:[%s4] sm:$0xff]
    %v221 = vld [vmem:[%s4 + $0x8] sm:$0xff]
    %v222 = vld [vmem:[%s4 + $0x10] sm:$0xff]
    %v223 = vld [vmem:[%s4 + $0x18] sm:$0xff]
    %v224 = vld [vmem:[%s7] sm:$0xff]
    %v225 = vld [vmem:[%s7 + $0x8] sm:$0xff]
    %v227 = vsel %vm124, %v220, 0
    %v230 = vsel %vm124, %v221, 0
    %v233 = vsel %vm124, %v222, 0
    %v236 = vsel %vm124, %v223, 0
    %238 = vmatprep.subr.mxu0 0.0
    %239 = vmatpush1.msra.mxu0 %v224
    %240 = vmatprep.subr.mxu0 0.0
    %241 = vmatpush1.msra.mxu0 %v225
    %242 = vmatprep.subr.mxu0 0.0
    %243 = vmatpush1.msra.mxu0 0.0
    %244 = vmatprep.subr.mxu0 0.0
    %245 = vmatpush1.msra.mxu0 0.0
    %246 = vmatprep.subr.mxu0 0.0
    %247 = vmatpush1.msra.mxu0 0.0
    %248 = vmatprep.subr.mxu0 0.0
    %249 = vmatpush1.msra.mxu0 0.0
    %250 = vmatprep.subr.mxu0 0.0
    %251 = vmatpush1.msra.mxu0 0.0
    %252 = vmatprep.subr.mxu0 0.0
    %253 = vmatpush1.msra.mxu0 0.0
    %254 = vmatprep.subr.mxu0 0.0
    %255 = vmatpush1.msra.mxu0 0.0
    %256 = vmatprep.subr.mxu0 0.0
    %257 = vmatpush1.msra.mxu0 0.0
    %258 = vmatprep.subr.mxu0 0.0
    %259 = vmatpush1.msra.mxu0 0.0
    %260 = vmatprep.subr.mxu0 0.0
    %261 = vmatpush1.msra.mxu0 0.0
    %262 = vmatprep.subr.mxu0 0.0
    %263 = vmatpush1.msra.mxu0 0.0
    %264 = vmatprep.subr.mxu0 0.0
    %265 = vmatpush1.msra.mxu0 0.0
    %266 = vmatprep.subr.mxu0 0.0
    %267 = vmatpush1.msra.mxu0 0.0
    %268 = vmatprep.subr.mxu0 0.0
    %269 = vmatpush1.msra.mxu0 0.0
    %270 = vmatprep.subr.mxu0 0.0
    %271 = vmatpush1.msra.mxu0 0.0
    %272 = vmatprep.subr.mxu0 0.0
    %273 = vmatpush1.msra.mxu0 0.0
    %274 = vmatprep.subr.mxu0 0.0
    %275 = vmatpush1.msra.mxu0 0.0
    %276 = vmatprep.subr.mxu0 0.0
    %277 = vmatpush1.msra.mxu0 0.0
    %278 = vmatprep.subr.mxu0 0.0
    %279 = vmatpush1.msra.mxu0 0.0
    %280 = vmatprep.subr.mxu0 0.0
    %281 = vmatpush1.msra.mxu0 0.0
    %282 = vmatprep.subr.mxu0 0.0
    %283 = vmatpush1.msra.mxu0 0.0
    %284 = vmatprep.subr.mxu0 0.0
    %285 = vmatpush1.msra.mxu0 0.0
    %286 = vmatprep.subr.mxu0 0.0
    %287 = vmatpush1.msra.mxu0 0.0
    %288 = vmatprep.subr.mxu0 0.0
    %289 = vmatpush1.msra.mxu0 0.0
    %290 = vmatprep.subr.mxu0 0.0
    %291 = vmatpush1.msra.mxu0 0.0
    %292 = vmatprep.subr.mxu0 0.0
    %293 = vmatpush1.msra.mxu0 0.0
    %294 = vmatprep.subr.mxu0 0.0
    %295 = vmatpush1.msra.mxu0 0.0
    %296 = vmatprep.subr.mxu0 0.0
    %297 = vmatpush1.msra.mxu0 0.0
    %298 = vmatprep.subr.mxu0 0.0
    %299 = vmatpush1.msra.mxu0 0.0
    %300 = vmatprep.subr.mxu0 0.0
    %301 = vmatpush1.msra.mxu0 0.0
    %302 = vmatprep.mubr.f32.mxu0 0.0
    %303 = vmatmul.mubr.f32.gmra.mrb[0].mxu0 %v227
    %v304 = vpop.f32.mrb[0].mxu0
    %v305 = vadd.f32 0.0, %v304
    %v306 = vpop.f32.mrb[0].mxu0
    %307 = vmatprep.mubr.f32.mxu0 0.0
    %308 = vmatmul.mubr.f32.gmra.mrb[0].mxu0 %v230
    %v309 = vpop.f32.mrb[0].mxu0
    %v310 = vadd.f32 0.0, %v309
    %v311 = vpop.f32.mrb[0].mxu0
    %312 = vmatprep.mubr.f32.mxu0 0.0
    %313 = vmatmul.mubr.f32.gmra.mrb[0].mxu0 %v233
    %v314 = vpop.f32.mrb[0].mxu0
    %v315 = vadd.f32 0.0, %v314
    %v316 = vpop.f32.mrb[0].mxu0
    %317 = vmatprep.mubr.f32.mxu0 0.0
    %318 = vmatmul.mubr.f32.gmra.mrb[0].mxu0 %v236
    %v319 = vpop.f32.mrb[0].mxu0
    %v320 = vadd.f32 0.0, %v319
    %v321 = vpop.f32.mrb[0].mxu0
    %322 = vdwg.mxu0
    %v323 = vlaneseq
    %v324 = vand.u32 %v323, 127
    %v325 = vld [vmem:[%s2] sm:$0xff]
    %v326 = vld [vmem:[%s2 + $0x8] sm:$0xff]
    %v327 = vld [vmem:[%s2 + $0x10] sm:$0xff]
    %v328 = vld [vmem:[%s2 + $0x18] sm:$0xff]
    %329 = vset.pattern.permute.xlu0 0
    %330 = vperm.xlu0 %329, %v325
    %v331 = vpop.permute.xlu0 %330
    %332 = vset.pattern.permute.xlu0 0
    %333 = vperm.xlu0 %332, %v326
    %v334 = vpop.permute.xlu0 %333
    %335 = vset.pattern.permute.xlu0 0
    %336 = vperm.xlu0 %335, %v327
    %v337 = vpop.permute.xlu0 %336
    %338 = vset.pattern.permute.xlu0 0
    %339 = vperm.xlu0 %338, %v328
    %v340 = vpop.permute.xlu0 %339
    %vm341 = vcmp.eq.s32.totalorder %v324, %v331
    %vm342 = vcmp.eq.s32.totalorder %v324, %v334
    %vm343 = vcmp.eq.s32.totalorder %v324, %v337
    %vm344 = vcmp.eq.s32.totalorder %v324, %v340
    %v345 = vsel %vm341, 1, 0
    %v346 = vsel %vm342, 1, 0
    %v347 = vsel %vm343, 1, 0
    %v348 = vsel %vm344, 1, 0
    %v349 = vcvt.s32.f32 %v345
    %v350 = vcvt.s32.f32 %v346
    %v351 = vcvt.s32.f32 %v347
    %v352 = vcvt.s32.f32 %v348
    %355 = vrot.lane.b32.xlu0 %v212, 120
    %v356 = vpop.permute.xlu0 %355
    %357 = vrot.lane.b32.xlu0 %v217, 120
    %v358 = vpop.permute.xlu0 %357
    %v362 = vsel %vm124, %v349, 0
    %v365 = vsel %vm124, %v350, 0
    %v368 = vsel %vm124, %v351, 0
    %v371 = vsel %vm124, %v352, 0
    %373 = vmatprep.subr.mxu0 0.0
    %374 = vmatpush1.msra.mxu0 %v356
    %375 = vmatprep.subr.mxu0 0.0
    %376 = vmatpush1.msra.mxu0 %v358
    %377 = vmatprep.subr.mxu0 0.0
    %378 = vmatpush1.msra.mxu0 0.0
    %379 = vmatprep.subr.mxu0 0.0
    %380 = vmatpush1.msra.mxu0 0.0
    %381 = vmatprep.subr.mxu0 0.0
    %382 = vmatpush1.msra.mxu0 0.0
    %383 = vmatprep.subr.mxu0 0.0
    %384 = vmatpush1.msra.mxu0 0.0
    %385 = vmatprep.subr.mxu0 0.0
    %386 = vmatpush1.msra.mxu0 0.0
    %387 = vmatprep.subr.mxu0 0.0
    %388 = vmatpush1.msra.mxu0 0.0
    %389 = vmatprep.subr.mxu0 0.0
    %390 = vmatpush1.msra.mxu0 0.0
    %391 = vmatprep.subr.mxu0 0.0
    %392 = vmatpush1.msra.mxu0 0.0
    %393 = vmatprep.subr.mxu0 0.0
    %394 = vmatpush1.msra.mxu0 0.0
    %395 = vmatprep.subr.mxu0 0.0
    %396 = vmatpush1.msra.mxu0 0.0
    %397 = vmatprep.subr.mxu0 0.0
    %398 = vmatpush1.msra.mxu0 0.0
    %399 = vmatprep.subr.mxu0 0.0
    %400 = vmatpush1.msra.mxu0 0.0
    %401 = vmatprep.subr.mxu0 0.0
    %402 = vmatpush1.msra.mxu0 0.0
    %403 = vmatprep.subr.mxu0 0.0
    %404 = vmatpush1.msra.mxu0 0.0
    %405 = vmatprep.subr.mxu0 0.0
    %406 = vmatpush1.msra.mxu0 0.0
    %407 = vmatprep.subr.mxu0 0.0
    %408 = vmatpush1.msra.mxu0 0.0
    %409 = vmatprep.subr.mxu0 0.0
    %410 = vmatpush1.msra.mxu0 0.0
    %411 = vmatprep.subr.mxu0 0.0
    %412 = vmatpush1.msra.mxu0 0.0
    %413 = vmatprep.subr.mxu0 0.0
    %414 = vmatpush1.msra.mxu0 0.0
    %415 = vmatprep.subr.mxu0 0.0
    %416 = vmatpush1.msra.mxu0 0.0
    %417 = vmatprep.subr.mxu0 0.0
    %418 = vmatpush1.msra.mxu0 0.0
    %419 = vmatprep.subr.mxu0 0.0
    %420 = vmatpush1.msra.mxu0 0.0
    %421 = vmatprep.subr.mxu0 0.0
    %422 = vmatpush1.msra.mxu0 0.0
    %423 = vmatprep.subr.mxu0 0.0
    %424 = vmatpush1.msra.mxu0 0.0
    %425 = vmatprep.subr.mxu0 0.0
    %426 = vmatpush1.msra.mxu0 0.0
    %427 = vmatprep.subr.mxu0 0.0
    %428 = vmatpush1.msra.mxu0 0.0
    %429 = vmatprep.subr.mxu0 0.0
    %430 = vmatpush1.msra.mxu0 0.0
    %431 = vmatprep.subr.mxu0 0.0
    %432 = vmatpush1.msra.mxu0 0.0
    %433 = vmatprep.subr.mxu0 0.0
    %434 = vmatpush1.msra.mxu0 0.0
    %435 = vmatprep.subr.mxu0 0.0
    %436 = vmatpush1.msra.mxu0 0.0
    %437 = vmatprep.mubr.f32.mxu0 0.0
    %438 = vmatmul.mubr.f32.gmra.mrb[0].mxu0 %v362
    %v439 = vpop.f32.mrb[0].mxu0
    %v440 = vadd.f32 0.0, %v439
    %v441 = vpop.f32.mrb[0].mxu0
    %442 = vmatprep.mubr.f32.mxu0 0.0
    %443 = vmatmul.mubr.f32.gmra.mrb[0].mxu0 %v365
    %v444 = vpop.f32.mrb[0].mxu0
    %v445 = vadd.f32 0.0, %v444
    %v446 = vpop.f32.mrb[0].mxu0
    %447 = vmatprep.mubr.f32.mxu0 0.0
    %448 = vmatmul.mubr.f32.gmra.mrb[0].mxu0 %v368
    %v449 = vpop.f32.mrb[0].mxu0
    %v450 = vadd.f32 0.0, %v449
    %v451 = vpop.f32.mrb[0].mxu0
    %452 = vmatprep.mubr.f32.mxu0 0.0
    %453 = vmatmul.mubr.f32.gmra.mrb[0].mxu0 %v371
    %v454 = vpop.f32.mrb[0].mxu0
    %v455 = vadd.f32 0.0, %v454
    %v456 = vpop.f32.mrb[0].mxu0
    %457 = vdwg.mxu0
    %462 = vrot.lane.b32.xlu0 %v440, 8
    %v463 = vpop.permute.xlu0 %462
    %464 = vrot.lane.b32.xlu0 %v445, 8
    %v465 = vpop.permute.xlu0 %464
    %466 = vrot.lane.b32.xlu0 %v450, 8
    %v467 = vpop.permute.xlu0 %466
    %468 = vrot.lane.b32.xlu0 %v455, 8
    %v469 = vpop.permute.xlu0 %468
    %v474 = vmul.f32 %v305, %v463
    %v475 = vmul.f32 %v310, %v465
    %v476 = vmul.f32 %v315, %v467
    %v477 = vmul.f32 %v320, %v469
    %v478 = vmul.f32 %v305, %v440
    %v479 = vmul.f32 %v310, %v445
    %v480 = vmul.f32 %v315, %v450
    %v481 = vmul.f32 %v320, %v455
    %v482 = vld [vmem:[%s5] sm:$0xff]
    %v483 = vld [vmem:[%s5 + $0x8] sm:$0xff]
    %v484 = vld [vmem:[%s5 + $0x10] sm:$0xff]
    %v485 = vld [vmem:[%s5 + $0x18] sm:$0xff]
    %487 = vset.pattern.permute.xlu0 0
    %488 = vperm.xlu0 %487, %v482
    %v489 = vpop.permute.xlu0 %488
    %492 = vset.pattern.permute.xlu0 0
    %493 = vperm.xlu0 %492, %v483
    %v494 = vpop.permute.xlu0 %493
    %497 = vset.pattern.permute.xlu0 0
    %498 = vperm.xlu0 %497, %v484
    %v499 = vpop.permute.xlu0 %498
    %502 = vset.pattern.permute.xlu0 0
    %503 = vperm.xlu0 %502, %v485
    %v504 = vpop.permute.xlu0 %503
    %v506 = vmul.f32 %v478, %v489
    %v507 = vmul.f32 %v479, %v494
    %v508 = vmul.f32 %v480, %v499
    %v509 = vmul.f32 %v481, %v504
    %510 = vset.pattern.permute.xlu0 1
    %511 = vperm.xlu0 %510, %v482
    %v512 = vpop.permute.xlu0 %511
    %514 = vset.pattern.permute.xlu0 1
    %515 = vperm.xlu0 %514, %v483
    %v516 = vpop.permute.xlu0 %515
    %518 = vset.pattern.permute.xlu0 1
    %519 = vperm.xlu0 %518, %v484
    %v520 = vpop.permute.xlu0 %519
    %522 = vset.pattern.permute.xlu0 1
    %523 = vperm.xlu0 %522, %v485
    %v524 = vpop.permute.xlu0 %523
    %v526 = vmul.f32 %v474, %v512
    %v527 = vmul.f32 %v475, %v516
    %v528 = vmul.f32 %v476, %v520
    %v529 = vmul.f32 %v477, %v524
    %530 = vset.pattern.permute.xlu0 2
    %531 = vperm.xlu0 %530, %v482
    %v532 = vpop.permute.xlu0 %531
    %534 = vset.pattern.permute.xlu0 2
    %535 = vperm.xlu0 %534, %v483
    %v536 = vpop.permute.xlu0 %535
    %538 = vset.pattern.permute.xlu0 2
    %539 = vperm.xlu0 %538, %v484
    %v540 = vpop.permute.xlu0 %539
    %542 = vset.pattern.permute.xlu0 2
    %543 = vperm.xlu0 %542, %v485
    %v544 = vpop.permute.xlu0 %543
    %v546 = vmul.f32 %v474, %v532
    %v547 = vmul.f32 %v475, %v536
    %v548 = vmul.f32 %v476, %v540
    %v549 = vmul.f32 %v477, %v544
    %550 = vset.pattern.permute.xlu0 3
    %551 = vperm.xlu0 %550, %v482
    %v552 = vpop.permute.xlu0 %551
    %554 = vset.pattern.permute.xlu0 3
    %555 = vperm.xlu0 %554, %v483
    %v556 = vpop.permute.xlu0 %555
    %558 = vset.pattern.permute.xlu0 3
    %559 = vperm.xlu0 %558, %v484
    %v560 = vpop.permute.xlu0 %559
    %562 = vset.pattern.permute.xlu0 3
    %563 = vperm.xlu0 %562, %v485
    %v564 = vpop.permute.xlu0 %563
    %v566 = vmul.f32 %v474, %v552
    %v567 = vmul.f32 %v475, %v556
    %v568 = vmul.f32 %v476, %v560
    %v569 = vmul.f32 %v477, %v564
    %574 = vrot.lane.b32.xlu0 %v546, 8
    %v575 = vpop.permute.xlu0 %574
    %576 = vrot.lane.b32.xlu0 %v547, 8
    %v577 = vpop.permute.xlu0 %576
    %578 = vrot.lane.b32.xlu0 %v548, 8
    %v579 = vpop.permute.xlu0 %578
    %580 = vrot.lane.b32.xlu0 %v549, 8
    %v581 = vpop.permute.xlu0 %580
    %590 = vrot.lane.b32.xlu0 %v566, 16
    %v591 = vpop.permute.xlu0 %590
    %592 = vrot.lane.b32.xlu0 %v567, 16
    %v593 = vpop.permute.xlu0 %592
    %594 = vrot.lane.b32.xlu0 %v568, 16
    %v595 = vpop.permute.xlu0 %594
    %596 = vrot.lane.b32.xlu0 %v569, 16
    %v597 = vpop.permute.xlu0 %596
    %v602 = vsel %vm121, %v506, %v526
    %v603 = vsel %vm121, %v507, %v527
    %v604 = vsel %vm121, %v508, %v528
    %v605 = vsel %vm121, %v509, %v529
    %v606 = vsel %vm124, %v602, %v575
    %v607 = vsel %vm124, %v603, %v577
    %v608 = vsel %vm124, %v604, %v579
    %v609 = vsel %vm124, %v605, %v581
    %v610 = vsel %vm127, %v606, %v591
    %v611 = vsel %vm127, %v607, %v593
    %v612 = vsel %vm127, %v608, %v595
    %v613 = vsel %vm127, %v609, %v597
    %v614 = vlaneseq
    %v615 = vshrl.u32 %v614, 7
    %v616 = vadd.s32 %v615, 8
    %v617 = vld [vmem:[%s3] sm:$0x1]
    %v618 = vlaneseq
    %v619 = vshrl.u32 %v618, 7
    %v620 = vsub.s32 0, %v619
    %v621 = vrot.slane %v617, %v620
    %vm622 = vcmp.eq.s32.totalorder %v615, %v621
    %vm623 = vcmp.eq.s32.totalorder %v616, %v621
    %v624 = vsel %vm622, 1, 0
    %v625 = vsel %vm623, 1, 0
    %v626 = vcvt.s32.f32 %v624
    %v627 = vcvt.s32.f32 %v625
    %v629 = vsel %vm130, %v626, 0
    %v632 = vsel %vm130, %v627, 0
    %634 = vmatprep.subr.mxu0 0.0
    %635 = vmatpush1.msra.mxu0 %v610
    %636 = vmatprep.subr.mxu0 0.0
    %637 = vmatpush1.msra.mxu0 %v611
    %638 = vmatprep.subr.mxu0 0.0
    %639 = vmatpush1.msra.mxu0 %v612
    %640 = vmatprep.subr.mxu0 0.0
    %641 = vmatpush1.msra.mxu0 %v613
    %642 = vmatprep.subr.mxu0 0.0
    %643 = vmatpush1.msra.mxu0 0.0
    %644 = vmatprep.subr.mxu0 0.0
    %645 = vmatpush1.msra.mxu0 0.0
    %646 = vmatprep.subr.mxu0 0.0
    %647 = vmatpush1.msra.mxu0 0.0
    %648 = vmatprep.subr.mxu0 0.0
    %649 = vmatpush1.msra.mxu0 0.0
    %650 = vmatprep.subr.mxu0 0.0
    %651 = vmatpush1.msra.mxu0 0.0
    %652 = vmatprep.subr.mxu0 0.0
    %653 = vmatpush1.msra.mxu0 0.0
    %654 = vmatprep.subr.mxu0 0.0
    %655 = vmatpush1.msra.mxu0 0.0
    %656 = vmatprep.subr.mxu0 0.0
    %657 = vmatpush1.msra.mxu0 0.0
    %658 = vmatprep.subr.mxu0 0.0
    %659 = vmatpush1.msra.mxu0 0.0
    %660 = vmatprep.subr.mxu0 0.0
    %661 = vmatpush1.msra.mxu0 0.0
    %662 = vmatprep.subr.mxu0 0.0
    %663 = vmatpush1.msra.mxu0 0.0
    %664 = vmatprep.subr.mxu0 0.0
    %665 = vmatpush1.msra.mxu0 0.0
    %666 = vmatprep.subr.mxu0 0.0
    %667 = vmatpush1.msra.mxu0 0.0
    %668 = vmatprep.subr.mxu0 0.0
    %669 = vmatpush1.msra.mxu0 0.0
    %670 = vmatprep.subr.mxu0 0.0
    %671 = vmatpush1.msra.mxu0 0.0
    %672 = vmatprep.subr.mxu0 0.0
    %673 = vmatpush1.msra.mxu0 0.0
    %674 = vmatprep.subr.mxu0 0.0
    %675 = vmatpush1.msra.mxu0 0.0
    %676 = vmatprep.subr.mxu0 0.0
    %677 = vmatpush1.msra.mxu0 0.0
    %678 = vmatprep.subr.mxu0 0.0
    %679 = vmatpush1.msra.mxu0 0.0
    %680 = vmatprep.subr.mxu0 0.0
    %681 = vmatpush1.msra.mxu0 0.0
    %682 = vmatprep.subr.mxu0 0.0
    %683 = vmatpush1.msra.mxu0 0.0
    %684 = vmatprep.subr.mxu0 0.0
    %685 = vmatpush1.msra.mxu0 0.0
    %686 = vmatprep.subr.mxu0 0.0
    %687 = vmatpush1.msra.mxu0 0.0
    %688 = vmatprep.subr.mxu0 0.0
    %689 = vmatpush1.msra.mxu0 0.0
    %690 = vmatprep.subr.mxu0 0.0
    %691 = vmatpush1.msra.mxu0 0.0
    %692 = vmatprep.subr.mxu0 0.0
    %693 = vmatpush1.msra.mxu0 0.0
    %694 = vmatprep.subr.mxu0 0.0
    %695 = vmatpush1.msra.mxu0 0.0
    %696 = vmatprep.subr.mxu0 0.0
    %697 = vmatpush1.msra.mxu0 0.0
    %698 = vmatprep.mubr.f32.mxu0 0.0
    %699 = vmatmul.mubr.f32.gmra.mrb[0].mxu0 %v629
    %v700 = vpop.f32.mrb[0].mxu0
    %v701 = vadd.f32 0.0, %v700
    %v702 = vpop.f32.mrb[0].mxu0
    %703 = vmatprep.mubr.f32.mxu0 0.0
    %704 = vmatmul.mubr.f32.gmra.mrb[0].mxu0 %v632
    %v705 = vpop.f32.mrb[0].mxu0
    %v706 = vadd.f32 0.0, %v705
    %v707 = vpop.f32.mrb[0].mxu0
    %708 = vdwg.mxu0
    %v709 = vmul.f32 %v701, %v40
    %v710 = vmul.f32 %v706, %v45
    %v711 = vmul.f32 %v701, %v51
    %v712 = vmul.f32 %v706, %v55
    %v713 = vmul.f32 %v701, %v61
    %v714 = vmul.f32 %v706, %v65
    %v715 = vmul.f32 %v701, %v71
    %v716 = vmul.f32 %v706, %v75
    %v717 = vmul.f32 %v701, %v81
    %v718 = vmul.f32 %v706, %v85
    %721 = vrot.lane.b32.xlu0 %v711, 32
    %v722 = vpop.permute.xlu0 %721
    %723 = vrot.lane.b32.xlu0 %v712, 32
    %v724 = vpop.permute.xlu0 %723
    %729 = vrot.lane.b32.xlu0 %v713, 64
    %v730 = vpop.permute.xlu0 %729
    %731 = vrot.lane.b32.xlu0 %v714, 64
    %v732 = vpop.permute.xlu0 %731
    %737 = vrot.lane.b32.xlu0 %v715, 96
    %v738 = vpop.permute.xlu0 %737
    %739 = vrot.lane.b32.xlu0 %v716, 96
    %v740 = vpop.permute.xlu0 %739
    %v743 = vsel %vm130, %v709, %v722
    %v744 = vsel %vm130, %v710, %v724
    %vm745 = vcmask 523264
    %v746 = vsel %vm745, %v743, %v730
    %v747 = vsel %vm745, %v744, %v732
    %vm748 = vcmask 785408
    %v749 = vsel %vm748, %v746, %v738
    %v750 = vsel %vm748, %v747, %v740
    %v751 = vld [vmem:[%s8] sm:$0xff]
    %v752 = vld [vmem:[%s8 + $0x8] sm:$0xff]
    %v753 = vld [vmem:[%s8 + $0x10] sm:$0xff]
    %v754 = vld [vmem:[%s8 + $0x18] sm:$0xff]
    %v755 = vld [vmem:[%s8 + $0x20] sm:$0xff]
    %v756 = vld [vmem:[%s8 + $0x28] sm:$0xff]
    %v757 = vld [vmem:[%s8 + $0x30] sm:$0xff]
    %v758 = vld [vmem:[%s8 + $0x38] sm:$0xff]
    %v759 = vld [vmem:[%s8 + $0x40] sm:$0xff]
    %v760 = vld [vmem:[%s8 + $0x48] sm:$0xff]
    %v761 = vld [vmem:[%s8 + $0x50] sm:$0xff]
    %v762 = vld [vmem:[%s8 + $0x58] sm:$0xff]
    %v763 = vld [vmem:[%s8 + $0x60] sm:$0xff]
    %v764 = vld [vmem:[%s8 + $0x68] sm:$0xff]
    %v765 = vld [vmem:[%s8 + $0x70] sm:$0xff]
    %v766 = vld [vmem:[%s8 + $0x78] sm:$0xff]
    %v767 = vld [vmem:[%s8 + $0x80] sm:$0xff]
    %v768 = vld [vmem:[%s8 + $0x88] sm:$0xff]
    %v769 = vld [vmem:[%s8 + $0x90] sm:$0xff]
    %v770 = vld [vmem:[%s8 + $0x98] sm:$0xff]
    %v771 = vsel %vm121, %v212, 0.0
    %v772 = vsel %vm121, %v217, 0.0
    %v774 = vsel %vm130, %v717, 0
    %v777 = vsel %vm130, %v718, 0
    %779 = vmatprep.subr.mxu0 0.0
    %780 = vmatpush1.msra.mxu0 %v751
    %781 = vmatprep.subr.mxu0 0.0
    %782 = vmatpush1.msra.mxu0 %v752
    %783 = vmatprep.subr.mxu0 0.0
    %784 = vmatpush1.msra.mxu0 %v753
    %785 = vmatprep.subr.mxu0 0.0
    %786 = vmatpush1.msra.mxu0 %v754
    %787 = vmatprep.subr.mxu0 0.0
    %788 = vmatpush1.msra.mxu0 %v755
    %789 = vmatprep.subr.mxu0 0.0
    %790 = vmatpush1.msra.mxu0 %v756
    %791 = vmatprep.subr.mxu0 0.0
    %792 = vmatpush1.msra.mxu0 %v757
    %793 = vmatprep.subr.mxu0 0.0
    %794 = vmatpush1.msra.mxu0 %v758
    %795 = vmatprep.subr.mxu0 0.0
    %796 = vmatpush1.msra.mxu0 %v759
    %797 = vmatprep.subr.mxu0 0.0
    %798 = vmatpush1.msra.mxu0 %v760
    %799 = vmatprep.subr.mxu0 0.0
    %800 = vmatpush1.msra.mxu0 %v761
    %801 = vmatprep.subr.mxu0 0.0
    %802 = vmatpush1.msra.mxu0 %v762
    %803 = vmatprep.subr.mxu0 0.0
    %804 = vmatpush1.msra.mxu0 %v763
    %805 = vmatprep.subr.mxu0 0.0
    %806 = vmatpush1.msra.mxu0 %v764
    %807 = vmatprep.subr.mxu0 0.0
    %808 = vmatpush1.msra.mxu0 %v765
    %809 = vmatprep.subr.mxu0 0.0
    %810 = vmatpush1.msra.mxu0 %v766
    %811 = vmatprep.subr.mxu0 0.0
    %812 = vmatpush1.msra.mxu0 %v767
    %813 = vmatprep.subr.mxu0 0.0
    %814 = vmatpush1.msra.mxu0 %v768
    %815 = vmatprep.subr.mxu0 0.0
    %816 = vmatpush1.msra.mxu0 %v769
    %817 = vmatprep.subr.mxu0 0.0
    %818 = vmatpush1.msra.mxu0 %v770
    %819 = vmatprep.subr.mxu0 0.0
    %820 = vmatpush1.msra.mxu0 0.0
    %821 = vmatprep.subr.mxu0 0.0
    %822 = vmatpush1.msra.mxu0 0.0
    %823 = vmatprep.subr.mxu0 0.0
    %824 = vmatpush1.msra.mxu0 0.0
    %825 = vmatprep.subr.mxu0 0.0
    %826 = vmatpush1.msra.mxu0 0.0
    %827 = vmatprep.subr.mxu0 0.0
    %828 = vmatpush1.msra.mxu0 0.0
    %829 = vmatprep.subr.mxu0 0.0
    %830 = vmatpush1.msra.mxu0 0.0
    %831 = vmatprep.subr.mxu0 0.0
    %832 = vmatpush1.msra.mxu0 0.0
    %833 = vmatprep.subr.mxu0 0.0
    %834 = vmatpush1.msra.mxu0 0.0
    %835 = vmatprep.subr.mxu0 0.0
    %836 = vmatpush1.msra.mxu0 0.0
    %837 = vmatprep.subr.mxu0 0.0
    %838 = vmatpush1.msra.mxu0 0.0
    %839 = vmatprep.subr.mxu0 0.0
    %840 = vmatpush1.msra.mxu0 0.0
    %841 = vmatprep.subr.mxu0 0.0
    %842 = vmatpush1.msra.mxu0 0.0
    %843 = vmatprep.mubr.f32.mxu0 %v774
    %844 = vmatmul.mubr.f32.gmra.mrb[0].mxu0 %v749
    %v845 = vpop.f32.mrb[0].mxu0
    %v846 = vadd.f32 %v771, %v845
    %v847 = vpop.f32.mrb[0].mxu0
    %848 = vmatprep.mubr.f32.mxu0 %v777
    %849 = vmatmul.mubr.f32.gmra.mrb[0].mxu0 %v750
    %v850 = vpop.f32.mrb[0].mxu0
    %v851 = vadd.f32 %v772, %v850
    %v852 = vpop.f32.mrb[0].mxu0
    %853 = vdwg.mxu0
    %854 = vst.msk [vmem:[#allocation2] sm:$0xff] %vm130, %v846
    %855 = vst.msk [vmem:[#allocation2 + $0x8] sm:$0xff] %vm130, %v851
    // Predicated region
    $region38: #{conv_forward.1} parent=1 // pred_check
      _
    $region39: #{conv_forward.1} parent=1 // pred_check_branch
      %857 = sbr.rel (0) target = $region41
    $region40: #{conv_forward.1} parent=1 // pred_region
      %s859 = ssub.s32 256, 256
      %860 = vsyncadd [#allocation3], %s859
      %s861 = sshll.u32 [#allocation2], 4
      %s862 = int_to_ptr.vmem [resolvable:$true] %s861
      %867 = dma.vmem_to_hbm [thread:$0]  %s862, 256, %s9, [#allocation3], 128, 128, 8
    $region41: #{conv_forward.1} parent=1 // pred_fallthru
      _
    // Predicated region
    $region42: #{conv_forward.1} parent=1 // pred_check
      _
    $region43: #{conv_forward.1} parent=1 // pred_check_branch
      %869 = sbr.rel (0) target = $region45
    $region44: #{conv_forward.1} parent=1 // pred_region
      %870 = dma.done [#allocation3], 256
    $region45: #{conv_forward.1} parent=1 // pred_fallthru
      _
    %871 = vsyncpa [#allocation3], 1

</llo_original>
